<compile_context>
chip_gen: v7x
topology: tpu7x:2x2x1
jax: 0.10.0
libtpu: 0.0.40
codegen_flags: <defaults>
</compile_context>

<pallas_src>
import functools

import jax
import jax.numpy as jnp
from jax import lax
from jax.experimental import pallas as pl
from jax.experimental.pallas import tpu as pltpu


def _round_up(x, m):
    return ((x + m - 1) // m) * m


def _encdec_kernel(h_ref, batch_ref, wn_ref, bn_ref, node_emb_ref, pooled_ref,
                   *, n_valid, tile_n, chunk, n_per_core, compute_dtype):
    c = pl.program_id(0)            # core (parallel axis)
    i = pl.program_id(1)            # node-tile index within this core (arbitrary axis)
    t = c * n_per_core + i          # logical (unclamped) node-tile index
    b_pad = pooled_ref.shape[0]

    # Per-core pooled partial-sum accumulator lives in the output block itself.
    @pl.when(i == 0)
    def _():
        pooled_ref[...] = jnp.zeros(pooled_ref.shape, pooled_ref.dtype)

    n_chunks = tile_n // chunk

    def chunk_body(cidx, carry):
        start = pl.multiple_of(cidx * chunk, chunk)

        # Load one (chunk, E) slab; leaky_relu in f32 (v5e VPU has no bf16 path).
        h = h_ref[pl.ds(start, chunk), :].astype(jnp.float32)
        h = jnp.where(h >= 0.0, h, 0.1 * h)

        # Zero rows past the real node count.  Handles the ragged last tile and
        # clamped phantom tiles without any wrapper-side padding, and keeps
        # stale-VMEM garbage (possibly NaN) out of the pooled sum.
        row = (t * tile_n + start
               + lax.broadcasted_iota(jnp.int32, (chunk, 1), 0))
        h = jnp.where(row < n_valid, h, 0.0)
        h_mx = h.astype(compute_dtype)

        # node_emb chunk = h @ Wn + bn   (MXU, f32 accumulate, narrow bf16 store)
        node_emb_ref[pl.ds(start, chunk), :] = (
            jnp.dot(h_mx, wn_ref[...], preferred_element_type=jnp.float32)
            + bn_ref[...]
        ).astype(node_emb_ref.dtype)

        # Pooled partial sum: per-chunk one-hot (B_pad, chunk) built in vregs,
        # matmul on the MXU (chunking bounds vreg pressure at large tile_n).
        gids = lax.broadcasted_iota(jnp.int32, (b_pad, chunk), 0)
        onehot = (gids == batch_ref[:, pl.ds(start, chunk)]).astype(compute_dtype)
        pooled_ref[...] += jnp.dot(onehot, h_mx,
                                   preferred_element_type=jnp.float32)
        return carry

    lax.fori_loop(0, n_chunks, chunk_body, 0)


def _vmem_budget_bytes():
    """Generation-aware scoped-VMEM limit (never the full physical VMEM)."""
    cap = 64 * 1024 * 1024          # conservative fallback (v7x per-TC physical)
    try:
        info = pltpu.get_tpu_info()
        cap_attr = int(getattr(info, "vmem_capacity_bytes", 0) or 0)
        if cap_attr > 0:
            cap = cap_attr
    except Exception:
        pass
    return min((cap * 3) // 4, 96 * 1024 * 1024)


def gnn_encoder_decoder_forward(h_node_pre, batch, params, num_graphs,
                                *, tile_n=None, compute_dtype=None):
    """h_node_pre: (N, E) f32/bf16 per-node GNN output, batch: (N,) int graph ids."""
    N, E = h_node_pre.shape
    stream_dtype = h_node_pre.dtype
    if compute_dtype is None:
        compute_dtype = jnp.bfloat16 if stream_dtype == jnp.bfloat16 else jnp.float32

    wn = params["w_node"].astype(compute_dtype)                   # (E, L)
    bn = params["b_node"].astype(jnp.float32).reshape(1, -1)      # (1, L) f32 bias
    L = wn.shape[1]
    B_pad = _round_up(max(num_graphs, 1), 8)
    h_bytes = jnp.dtype(stream_dtype).itemsize

    # ---- VMEM budget & node-tile size (double-buffered h/batch/node_emb tiles) ----
    vmem_limit = _vmem_budget_bytes()
    budget = vmem_limit // 2
    if tile_n is None:
        resident = 2 * (E * L * 2 + L * 4) + 2 * B_pad * E * 4 + (1 << 16)
        tile_n = 128
        for cand in (8192, 4096, 2048, 1024, 512, 256, 128):
            per_tile = 2 * cand * (E * h_bytes + 4 + L * h_bytes)
            if resident + per_tile <= budget:
                tile_n = cand
                break
        tile_n = min(tile_n, _round_up(N, 128))
    assert tile_n % 128 == 0, "tile_n must be a multiple of 128"

    n_tiles = pl.cdiv(N, tile_n)
    num_cores = 2 if n_tiles >= 2 else 1     # v7x: 2 TCs; harmless loop on 1-TC chips
    n_per_core = pl.cdiv(n_tiles, num_cores)
    n_out_rows = num_cores * n_per_core * tile_n

    batch2d = batch.astype(jnp.int32).reshape(1, N)
    chunk = min(512, tile_n)

    last_tile = n_tiles - 1

    def h_map(c, i):                          # clamp: phantom tiles re-read last tile
        return (jnp.minimum(c * n_per_core + i, last_tile), 0)

    def batch_map(c, i):
        return (0, jnp.minimum(c * n_per_core + i, last_tile))

    kernel = functools.partial(
        _encdec_kernel, n_valid=N, tile_n=tile_n, chunk=chunk,
        n_per_core=n_per_core, compute_dtype=compute_dtype)

    flops = (2 * n_out_rows * E * L          # node_emb matmul
             + 2 * n_out_rows * E * B_pad    # one-hot pooling matmul
             + 4 * n_out_rows * E)           # leaky relu + masks
    bytes_accessed = (n_out_rows * E * h_bytes + N * 4          # h + batch reads
                      + n_out_rows * L * h_bytes                # node_emb writes
                      + num_cores * B_pad * E * 4               # pooled partials
                      + (E * L + L) * 4)                        # weights

    node_emb_p, pooled_parts = pl.pallas_call(
        kernel,
        out_shape=(
            jax.ShapeDtypeStruct((n_out_rows, L), stream_dtype),
            jax.ShapeDtypeStruct((num_cores, B_pad, E), jnp.float32),
        ),
        grid_spec=pltpu.PrefetchScalarGridSpec(
            num_scalar_prefetch=0,
            grid=(num_cores, n_per_core),
            in_specs=[
                pl.BlockSpec((tile_n, E), h_map),                 # h node tiles
                pl.BlockSpec((1, tile_n), batch_map),             # graph ids per tile
                pl.BlockSpec((E, L), lambda c, i: (0, 0)),        # Wn (resident)
                pl.BlockSpec((1, L), lambda c, i: (0, 0)),        # bn (resident)
            ],
            out_specs=(
                pl.BlockSpec((tile_n, L), lambda c, i: (c * n_per_core + i, 0)),
                pl.BlockSpec((None, B_pad, E), lambda c, i: (c, 0, 0)),
            ),
        ),
        compiler_params=pltpu.CompilerParams(
            dimension_semantics=("parallel", "arbitrary"),
            vmem_limit_bytes=int(vmem_limit),
        ),
        cost_estimate=pl.CostEstimate(
            flops=int(flops), transcendentals=0,
            bytes_accessed=int(bytes_accessed)),
    )(h_node_pre, batch2d, wn, bn)

    # ---- tiny epilogue in XLA: combine per-core partials, mean pool, (E x 6) head ----
    pooled_sum = pooled_parts.sum(axis=0)[:num_graphs]            # (B, E) f32
    counts = jnp.zeros((num_graphs,), jnp.float32).at[batch].add(1.0)
    h_graph = pooled_sum / jnp.maximum(counts, 1.0)[:, None]
    logits = (h_graph @ params["w_cls"].astype(jnp.float32)
              + params["b_cls"].astype(jnp.float32))

    node_emb = node_emb_p[:N] if n_out_rows != N else node_emb_p  # row-only slice
    return node_emb, logits


def _ref_forward(h_node_pre, batch, params, num_graphs):
    """Pure-JAX reference for correctness check (f32)."""
    h = jnp.where(h_node_pre >= 0, h_node_pre, 0.1 * h_node_pre)
    onehot = (jnp.arange(num_graphs)[:, None] == batch[None, :]).astype(jnp.float32)
    counts = jnp.maximum(onehot.sum(axis=1, keepdims=True), 1.0)
    pooled = (onehot @ h) / counts
    node_emb = h @ params["w_node"] + params["b_node"]
    logits = pooled @ params["w_cls"] + params["b_cls"]
    return node_emb, logits


if __name__ == "__main__":
    EMB, LAT, NUM_CLS = 64, 16, 6      # emb_dim (scaled down), latent_dim, 6 classes

    key = jax.random.PRNGKey(0)
    k1, k2, k3, k4, k5, k6 = jax.random.split(key, 6)

    params = {
        "w_node": jax.random.normal(k2, (EMB, LAT), jnp.float32) / jnp.sqrt(EMB),
        "b_node": jax.random.normal(k3, (LAT,), jnp.float32) * 0.01,
        "w_cls": jax.random.normal(k4, (EMB, NUM_CLS), jnp.float32) / jnp.sqrt(EMB),
        "b_cls": jax.random.normal(k5, (NUM_CLS,), jnp.float32) * 0.01,
    }

    # Dataset A: 3 graphs, 200 nodes.
    hA = jax.random.normal(k1, (200, EMB), jnp.float32)
    batchA = jnp.concatenate([jnp.full((70,), 0, jnp.int32),
                              jnp.full((60,), 1, jnp.int32),
                              jnp.full((70,), 2, jnp.int32)])
    # Dataset B: 5 graphs, 300 nodes (exercises ragged last tile + phantom tile).
    hB = jax.random.normal(k6, (300, EMB), jnp.float32)
    batchB = jnp.concatenate([jnp.full((40,), 0, jnp.int32),
                              jnp.full((100,), 1, jnp.int32),
                              jnp.full((25,), 2, jnp.int32),
                              jnp.full((80,), 3, jnp.int32),
                              jnp.full((55,), 4, jnp.int32)])

    def check(h, batch, nb, tile_n, tol):
        node_emb, logits = gnn_encoder_decoder_forward(
            h, batch, params, nb, tile_n=tile_n)
        jax.block_until_ready((node_emb, logits))
        ref_emb, ref_logits = _ref_forward(h.astype(jnp.float32), batch, params, nb)
        assert node_emb.shape == (h.shape[0], LAT)
        assert logits.shape == (nb, NUM_CLS)
        assert jnp.allclose(node_emb.astype(jnp.float32), ref_emb,
                            atol=tol, rtol=tol), "node_emb mismatch"
        assert jnp.allclose(logits.astype(jnp.float32), ref_logits,
                            atol=tol, rtol=tol), "logits mismatch"

    # f32 streams, 2 node tiles -> one per core (megacore path on v7x).
    check(hA, batchA, 3, 128, 1e-2)
    # bf16 HBM streams (as the upstream GNN would emit), auto tile size.
    check(hA.astype(jnp.bfloat16), batchA, 3, None, 3e-2)
    # bf16, 3 node tiles over 2 cores -> ragged last tile + one phantom tile.
    check(hB.astype(jnp.bfloat16), batchB, 5, 128, 3e-2)

    print("KERNEL_OK")
</pallas_src>

<mosaic_0001>
module attributes {stable_mosaic.version = 11 : i64} {
  func.func @_encdec_kernel(%arg0: i32, %arg1: i32, %arg2: memref<128x64xf32, #tpu.memory_space<vmem>>, %arg3: memref<1x128xi32, #tpu.memory_space<vmem>>, %arg4: memref<64x16xf32, #tpu.memory_space<vmem>>, %arg5: memref<1x16xf32, #tpu.memory_space<vmem>>, %arg6: memref<128x16xf32, #tpu.memory_space<vmem>>, %arg7: memref<1x8x64xf32, #tpu.memory_space<vmem>>) attributes {dimension_semantics = [#tpu.dimension_semantics<parallel>, #tpu.dimension_semantics<arbitrary>], iteration_bounds = array<i64: 2, 1>, scalar_prefetch = 0 : i64, scratch_operands = 0 : i64, tpu.core_type = #tpu.core_type<tc>, window_params = [{transform_indices = @transform_0, window_bounds = array<i64: 128, 64>}, {transform_indices = @transform_1, window_bounds = array<i64: 1, 128>}, {pipeline_mode = #tpu.pipeline_mode<synchronous>, transform_indices = @transform_2, window_bounds = array<i64: 64, 16>}, {pipeline_mode = #tpu.pipeline_mode<synchronous>, transform_indices = @transform_3, window_bounds = array<i64: 1, 16>}, {transform_indices = @transform_4, window_bounds = array<i64: 128, 16>}, {transform_indices = @transform_5, window_bounds = array<i64: 1, 8, 64>}]} {
    %c1_i32 = arith.constant 1 : i32
    %0 = arith.muli %arg0, %c1_i32 : i32
    %1 = arith.addi %0, %arg1 : i32
    %c0_i32 = arith.constant 0 : i32
    %2 = arith.cmpi eq, %arg1, %c0_i32 : i32
    %3 = arith.extui %2 : i1 to i32
    %c0_i32_0 = arith.constant 0 : i32
    %4 = arith.cmpi ne, %3, %c0_i32_0 : i32
    scf.if %4 {
      %cst_20 = arith.constant 0.000000e+00 : f32
      %46 = vector.broadcast %cst_20 : f32 to vector<8x64xf32>
      %c0_21 = arith.constant 0 : index
      %c0_22 = arith.constant 0 : index
      %c0_23 = arith.constant 0 : index
      %47 = vector.load %arg7[%c0_21, %c0_22, %c0_23] : memref<1x8x64xf32, #tpu.memory_space<vmem>>, vector<1x8x64xf32>
      %48 = vector.shape_cast %47 : vector<1x8x64xf32> to vector<8x64xf32>
      %49 = vector.shape_cast %46 : vector<8x64xf32> to vector<1x8x64xf32>
      tpu.vector_store %arg7[%c0_21, %c0_22, %c0_23], %49 {strides = array<i32>} : memref<1x8x64xf32, #tpu.memory_space<vmem>>, vector<1x8x64xf32>,
    } else {
    }
    %c0_i32_1 = arith.constant 0 : i32
    %c128_i32 = arith.constant 128 : i32
    %5 = arith.muli %c0_i32_1, %c128_i32 : i32
    %6 = tpu.assume_multiple %5, 128 : i32
    %7 = arith.index_cast %6 : i32 to index
    %c0 = arith.constant 0 : index
    %8 = vector.load %arg2[%7, %c0] : memref<128x64xf32, #tpu.memory_space<vmem>>, vector<128x64xf32>
    %cst = arith.constant 0.000000e+00 : f32
    %9 = vector.broadcast %cst : f32 to vector<128x64xf32>
    %10 = arith.cmpf oge, %8, %9 : vector<128x64xf32>
    %cst_2 = arith.constant 1.000000e-01 : f32
    %11 = vector.broadcast %cst_2 : f32 to vector<128x64xf32>
    %12 = arith.mulf %11, %8 : vector<128x64xf32>
    %13 = arith.select %10, %8, %12 : vector<128x64xi1>, vector<128x64xf32>
    %c128_i32_3 = arith.constant 128 : i32
    %14 = arith.muli %1, %c128_i32_3 : i32
    %15 = arith.addi %14, %6 : i32
    %16 = tpu.iota {dimensions = array<i32: 0>} : vector<128x1xi32>
    %17 = vector.broadcast %15 : i32 to vector<128x1xi32>
    %18 = arith.addi %17, %16 : vector<128x1xi32>
    %c200_i32 = arith.constant 200 : i32
    %19 = vector.broadcast %c200_i32 : i32 to vector<128x1xi32>
    %20 = arith.cmpi slt, %18, %19 : vector<128x1xi32>
    %cst_4 = arith.constant 0.000000e+00 : f32
    %21 = vector.shape_cast %20 : vector<128x1xi1> to vector<128x1xi1>
    %22 = vector.broadcast %21 : vector<128x1xi1> to vector<128x64xi1>
    %23 = vector.broadcast %cst_4 : f32 to vector<128x64xf32>
    %24 = arith.select %22, %13, %23 : vector<128x64xi1>, vector<128x64xf32>
    %c0_5 = arith.constant 0 : index
    %c0_6 = arith.constant 0 : index
    %25 = vector.load %arg4[%c0_5, %c0_6] : memref<64x16xf32, #tpu.memory_space<vmem>>, vector<64x16xf32>
    %cst_7 = arith.constant dense<0.000000e+00> : vector<128x16xf32>
    %26 = tpu.matmul %24, %25, %cst_7 {dimension_numbers = #tpu.dot_dimension_numbers<[1], [0], [0], [1], [0, 0, 1, 1], [], []>} : vector<128x64xf32>, vector<64x16xf32>, vector<128x16xf32> -> vector<128x16xf32>
    %c0_8 = arith.constant 0 : index
    %c0_9 = arith.constant 0 : index
    %27 = vector.load %arg5[%c0_8, %c0_9] : memref<1x16xf32, #tpu.memory_space<vmem>>, vector<1x16xf32>
    %28 = vector.broadcast %27 : vector<1x16xf32> to vector<128x16xf32>
    %29 = arith.addf %26, %28 : vector<128x16xf32>
    %30 = arith.index_cast %6 : i32 to index
    %c0_10 = arith.constant 0 : index
    %31 = vector.load %arg6[%30, %c0_10] : memref<128x16xf32, #tpu.memory_space<vmem>>, vector<128x16xf32>
    tpu.vector_store %arg6[%30, %c0_10], %29 {strides = array<i32>} : memref<128x16xf32, #tpu.memory_space<vmem>>, vector<128x16xf32>,
    %32 = tpu.iota {dimensions = array<i32: 0>} : vector<8x128xi32>
    %c0_11 = arith.constant 0 : index
    %33 = arith.index_cast %6 : i32 to index
    %34 = vector.load %arg3[%c0_11, %33] : memref<1x128xi32, #tpu.memory_space<vmem>>, vector<1x128xi32>
    %35 = vector.broadcast %34 : vector<1x128xi32> to vector<8x128xi32>
    %36 = arith.cmpi eq, %32, %35 : vector<8x128xi32>
    %37 = arith.extui %36 : vector<8x128xi1> to vector<8x128xi32>
    %38 = arith.sitofp %37 : vector<8x128xi32> to vector<8x128xf32>
    %c0_12 = arith.constant 0 : index
    %c0_13 = arith.constant 0 : index
    %c0_14 = arith.constant 0 : index
    %39 = vector.load %arg7[%c0_12, %c0_13, %c0_14] : memref<1x8x64xf32, #tpu.memory_space<vmem>>, vector<1x8x64xf32>
    %40 = vector.shape_cast %39 : vector<1x8x64xf32> to vector<8x64xf32>
    %cst_15 = arith.constant dense<0.000000e+00> : vector<8x64xf32>
    %41 = tpu.matmul %38, %24, %cst_15 {dimension_numbers = #tpu.dot_dimension_numbers<[1], [0], [0], [1], [0, 0, 1, 1], [], []>} : vector<8x128xf32>, vector<128x64xf32>, vector<8x64xf32> -> vector<8x64xf32>
    %42 = arith.addf %40, %41 : vector<8x64xf32>
    %c0_16 = arith.constant 0 : index
    %c0_17 = arith.constant 0 : index
    %c0_18 = arith.constant 0 : index
    %43 = vector.load %arg7[%c0_16, %c0_17, %c0_18] : memref<1x8x64xf32, #tpu.memory_space<vmem>>, vector<1x8x64xf32>
    %44 = vector.shape_cast %43 : vector<1x8x64xf32> to vector<8x64xf32>
    %45 = vector.shape_cast %42 : vector<8x64xf32> to vector<1x8x64xf32>
    tpu.vector_store %arg7[%c0_16, %c0_17, %c0_18], %45 {strides = array<i32>} : memref<1x8x64xf32, #tpu.memory_space<vmem>>, vector<1x8x64xf32>,
    %c1_i32_19 = arith.constant 1 : i32
    return
  }
  func.func @transform_0(%arg0: i32, %arg1: i32) -> (i32, i32) {
    %c1_i32 = arith.constant 1 : i32
    %0 = arith.muli %arg0, %c1_i32 : i32
    %1 = arith.addi %0, %arg1 : i32
    %c1_i32_0 = arith.constant 1 : i32
    %2 = arith.minsi %1, %c1_i32_0 : i32
    %c0_i32 = arith.constant 0 : i32
    %c0_i32_1 = arith.constant 0 : i32
    return %2, %c0_i32 : i32, i32
  }
  func.func @transform_1(%arg0: i32, %arg1: i32) -> (i32, i32) {
    %c1_i32 = arith.constant 1 : i32
    %0 = arith.muli %arg0, %c1_i32 : i32
    %1 = arith.addi %0, %arg1 : i32
    %c1_i32_0 = arith.constant 1 : i32
    %2 = arith.minsi %1, %c1_i32_0 : i32
    %c0_i32 = arith.constant 0 : i32
    %c0_i32_1 = arith.constant 0 : i32
    return %c0_i32, %2 : i32, i32
  }
  func.func @transform_2(%arg0: i32, %arg1: i32) -> (i32, i32) {
    %c0_i32 = arith.constant 0 : i32
    %c0_i32_0 = arith.constant 0 : i32
    %c0_i32_1 = arith.constant 0 : i32
    return %c0_i32, %c0_i32_0 : i32, i32
  }
  func.func @transform_3(%arg0: i32, %arg1: i32) -> (i32, i32) {
    %c0_i32 = arith.constant 0 : i32
    %c0_i32_0 = arith.constant 0 : i32
    %c0_i32_1 = arith.constant 0 : i32
    return %c0_i32, %c0_i32_0 : i32, i32
  }
  func.func @transform_4(%arg0: i32, %arg1: i32) -> (i32, i32) {
    %c1_i32 = arith.constant 1 : i32
    %0 = arith.muli %arg0, %c1_i32 : i32
    %1 = arith.addi %0, %arg1 : i32
    %c0_i32 = arith.constant 0 : i32
    %c0_i32_0 = arith.constant 0 : i32
    return %1, %c0_i32 : i32, i32
  }
  func.func @transform_5(%arg0: i32, %arg1: i32) -> (i32, i32, i32) {
    %c0_i32 = arith.constant 0 : i32
    %c0_i32_0 = arith.constant 0 : i32
    %c0_i32_1 = arith.constant 0 : i32
    return %arg0, %c0_i32, %c0_i32_0 : i32, i32, i32
  }
}

</mosaic_0001>

<llo_original>
// kernel: tpu_custom_call.1
$region0: #{tpu_custom_call.1}
  #allocation0 [shape = 'u32[]', space=smem, size = 0x4, offset = 0x4, fixed_abs, tag = 'smem constant byte address 0x4 - core index']
  #allocation1 [shape = 'u32[144,128]{1,0:T(1,128)}', space=vmem, size = 0x12000, scoped, tag = 'internal scratch']
  %s0 = inlined_call_operand.vmem [shape: f32[200,64], index: 0, kind: input, shape index: {}]
  %s1 = inlined_call_operand.vmem [shape: s32[1,200], index: 1, kind: input, shape index: {}]
  %s2 = inlined_call_operand.vmem [shape: f32[64,16], index: 2, kind: input, shape index: {}]
  %s3 = inlined_call_operand.vmem [shape: f32[1,16], index: 3, kind: input, shape index: {}]
  %s4 = inlined_call_operand.vmem [shape: f32[256,16], index: 4, kind: output, shape index: {0}]
  %s5 = inlined_call_operand.hbm [shape: f32[2,8,64], index: 5, kind: output, shape index: {1}]
  %6 = xla_tuple %s4, %s5
  %s7 = sld [smem:[#allocation0]]
  $region61: #{tpu_custom_call.1} parent=0
    _
  %s9 = ssub.s32 1, %s7
  %s10 = scalar_select 0, %s9, %s7
  $region1: #{tpu_custom_call.1} parent=0
    #allocation2 [shape = 'u8[8192]{0}', space=vmem, size = 0x2000, scoped, tag = 'output window, operand 1']
    #allocation3 [shape = 's32[2]{0}', space=sflag, size = 0x8, scoped, tag = 'scoped memory for tpu_custom_call.1']
    %11 = vsyncpa [#allocation3], 0
    %s12 = scalar_lea.sflag [#allocation3], 1
    %13 = vsyncpa %s12, 0
    loop: start=0, step=1, limit=4
    $region2: #{tpu_custom_call.1} parent=1 // loop_pre_header
      _
    $region3: #{tpu_custom_call.1} parent=1 // loop_header
      %s15 = sphi 0, %s19
      %p16 = scmp.ge.s32.totalorder %s15, 4
      %s22 = sphi 0, %s34
      %s23 = sphi 0, %s30
      %s24 = sphi 0, %s22
      %s25 = sphi 0, %s23
      %s26 = sphi 0, %s24
      %s27 = sphi 0, %s25
      %s43 = sphi 0, %s45
      %s46 = sphi 0, %s43
      %s47 = sphi 0, %s46
      %s63 = sphi 0, %s47
      %s75 = sphi 0, %s77
      %s78 = sphi 0, %s75
      %s79 = sphi 0, %s78
      %s95 = sphi 0, %s79
      %s99 = sphi 0, %s99
      %s101 = sphi 0, %s99
      %s102 = sphi 0, %s101
      %s116 = sphi 0, %s102
      %s120 = sphi 0, %s120
      %s122 = sphi 0, %s120
      %s123 = sphi 0, %s122
      %s137 = sphi 0, %s123
      %s145 = sphi 0, %s147
      %s148 = sphi 0, %s145
      %s149 = sphi 0, %s148
      %s165 = sphi 0, %s149
      %s171 = sphi 0, %s173
      %s174 = sphi 0, %s171
      %s175 = sphi 0, %s174
      %s191 = sphi 0, %s175
    $region4: #{tpu_custom_call.1} parent=1 // loop_header_branch
      %18 = sbr.rel (%p16) target = $region8
    $region5: #{tpu_custom_call.1} parent=1 // loop_body
      %s20 = ssub.s32 %s15, 1
      %s21 = ssub.s32 %s15, 2
      %s28 = sadd.s32 1, %s23
      %p29 = scmp.ge.s32.totalorder %s28, 1
      %s30 = scalar_select %p29, 0, %s28
      %s31 = sadd.s32 1, %s22
      %s32 = scalar_select %p29, %s31, %s22
      %p33 = scmp.ge.s32.totalorder %s32, 2
      %s34 = scalar_select %p33, 0, %s32
      %s35 = sadd.s32 %s22, %s23
      %p36 = scmp.lt.s32.totalorder %s35, 1
      %s37 = scalar_select %p36, %s35, 1
      %s38 = sadd.s32 %s34, %s30
      %p39 = scmp.lt.s32.totalorder %s38, 1
      %s40 = scalar_select %p39, %s38, 1
      %s41 = ssub.s32 %s37, %s40
      %p42 = scmp.eq.s32.totalorder %s41, 0
      %s44 = sadd.s32 %s43, 1
      %s45 = scalar_select %p42, %s43, %s44
      %p48 = pneg %p42
      %p49 = scmp.eq.s32.totalorder %s15, 1
      %p50 = por %p48, %p49
      %p51 = scmp.ne.s32.totalorder %s43, %s46
      %p52 = scmp.eq.s32.totalorder %s15, 0
      %p53 = por %p51, %p52
      %p54 = scmp.ne.s32.totalorder %s43, %s46
      %p55 = scmp.eq.s32.totalorder %s20, 1
      %p56 = por %p54, %p55
      %p57 = scmp.ne.s32.totalorder %s46, %s47
      %p58 = scmp.eq.s32.totalorder %s20, 0
      %p59 = por %p57, %p58
      %p60 = scmp.ne.s32.totalorder %s46, %s47
      %p61 = scmp.eq.s32.totalorder %s21, 1
      %p62 = por %p60, %p61
      %p64 = scmp.ne.s32.totalorder %s47, %s63
      %p65 = scmp.eq.s32.totalorder %s21, 0
      %p66 = por %p64, %p65
      %s67 = sadd.s32 %s22, %s23
      %p68 = scmp.lt.s32.totalorder %s67, 1
      %s69 = scalar_select %p68, %s67, 1
      %s70 = sadd.s32 %s34, %s30
      %p71 = scmp.lt.s32.totalorder %s70, 1
      %s72 = scalar_select %p71, %s70, 1
      %s73 = ssub.s32 %s69, %s72
      %p74 = scmp.eq.s32.totalorder %s73, 0
      %s76 = sadd.s32 %s75, 1
      %s77 = scalar_select %p74, %s75, %s76
      %p80 = pneg %p74
      %p81 = scmp.eq.s32.totalorder %s15, 1
      %p82 = por %p80, %p81
      %p83 = scmp.ne.s32.totalorder %s75, %s78
      %p84 = scmp.eq.s32.totalorder %s15, 0
      %p85 = por %p83, %p84
      %p86 = scmp.ne.s32.totalorder %s75, %s78
      %p87 = scmp.eq.s32.totalorder %s20, 1
      %p88 = por %p86, %p87
      %p89 = scmp.ne.s32.totalorder %s78, %s79
      %p90 = scmp.eq.s32.totalorder %s20, 0
      %p91 = por %p89, %p90
      %p92 = scmp.ne.s32.totalorder %s78, %s79
      %p93 = scmp.eq.s32.totalorder %s21, 1
      %p94 = por %p92, %p93
      %p96 = scmp.ne.s32.totalorder %s79, %s95
      %p97 = scmp.eq.s32.totalorder %s21, 0
      %p98 = por %p96, %p97
      %s100 = sadd.s32 %s99, 1
      %p103 = scmp.eq.s32.totalorder %s15, 1
      %p104 = scmp.ne.s32.totalorder %s99, %s101
      %p105 = scmp.eq.s32.totalorder %s15, 0
      %p106 = por %p104, %p105
      %p107 = scmp.ne.s32.totalorder %s99, %s101
      %p108 = scmp.eq.s32.totalorder %s20, 1
      %p109 = por %p107, %p108
      %p110 = scmp.ne.s32.totalorder %s101, %s102
      %p111 = scmp.eq.s32.totalorder %s20, 0
      %p112 = por %p110, %p111
      %p113 = scmp.ne.s32.totalorder %s101, %s102
      %p114 = scmp.eq.s32.totalorder %s21, 1
      %p115 = por %p113, %p114
      %p117 = scmp.ne.s32.totalorder %s102, %s116
      %p118 = scmp.eq.s32.totalorder %s21, 0
      %p119 = por %p117, %p118
      %s121 = sadd.s32 %s120, 1
      %p124 = scmp.eq.s32.totalorder %s15, 1
      %p125 = scmp.ne.s32.totalorder %s120, %s122
      %p126 = scmp.eq.s32.totalorder %s15, 0
      %p127 = por %p125, %p126
      %p128 = scmp.ne.s32.totalorder %s120, %s122
      %p129 = scmp.eq.s32.totalorder %s20, 1
      %p130 = por %p128, %p129
      %p131 = scmp.ne.s32.totalorder %s122, %s123
      %p132 = scmp.eq.s32.totalorder %s20, 0
      %p133 = por %p131, %p132
      %p134 = scmp.ne.s32.totalorder %s122, %s123
      %p135 = scmp.eq.s32.totalorder %s21, 1
      %p136 = por %p134, %p135
      %p138 = scmp.ne.s32.totalorder %s123, %s137
      %p139 = scmp.eq.s32.totalorder %s21, 0
      %p140 = por %p138, %p139
      %s141 = sadd.s32 %s22, %s23
      %s142 = sadd.s32 %s34, %s30
      %s143 = ssub.s32 %s141, %s142
      %p144 = scmp.eq.s32.totalorder %s143, 0
      %s146 = sadd.s32 %s145, 1
      %s147 = scalar_select %p144, %s145, %s146
      %p150 = pneg %p144
      %p151 = scmp.eq.s32.totalorder %s15, 1
      %p152 = por %p150, %p151
      %p153 = scmp.ne.s32.totalorder %s145, %s148
      %p154 = scmp.eq.s32.totalorder %s15, 0
      %p155 = por %p153, %p154
      %p156 = scmp.ne.s32.totalorder %s145, %s148
      %p157 = scmp.eq.s32.totalorder %s20, 1
      %p158 = por %p156, %p157
      %p159 = scmp.ne.s32.totalorder %s148, %s149
      %p160 = scmp.eq.s32.totalorder %s20, 0
      %p161 = por %p159, %p160
      %p162 = scmp.ne.s32.totalorder %s148, %s149
      %p163 = scmp.eq.s32.totalorder %s21, 1
      %p164 = por %p162, %p163
      %p166 = scmp.ne.s32.totalorder %s149, %s165
      %p167 = scmp.eq.s32.totalorder %s21, 0
      %p168 = por %p166, %p167
      %s169 = ssub.s32 %s22, %s34
      %p170 = scmp.eq.s32.totalorder %s169, 0
      %s172 = sadd.s32 %s171, 1
      %s173 = scalar_select %p170, %s171, %s172
      %p176 = pneg %p170
      %p177 = scmp.eq.s32.totalorder %s15, 1
      %p178 = por %p176, %p177
      %p179 = scmp.ne.s32.totalorder %s171, %s174
      %p180 = scmp.eq.s32.totalorder %s15, 0
      %p181 = por %p179, %p180
      %p182 = scmp.ne.s32.totalorder %s171, %s174
      %p183 = scmp.eq.s32.totalorder %s20, 1
      %p184 = por %p182, %p183
      %p185 = scmp.ne.s32.totalorder %s174, %s175
      %p186 = scmp.eq.s32.totalorder %s20, 0
      %p187 = por %p185, %p186
      %p188 = scmp.ne.s32.totalorder %s174, %s175
      %p189 = scmp.eq.s32.totalorder %s21, 1
      %p190 = por %p188, %p189
      %p192 = scmp.ne.s32.totalorder %s175, %s191
      %p193 = scmp.eq.s32.totalorder %s21, 0
      %p194 = por %p192, %p193
      %p195 = scmp.le.s32.totalorder 1, %s15
      %p196 = scmp.lt.s32.totalorder %s15, 3
      %p197 = pnand %p195, %p196
      %p198 = pneg %p197
      // Predicated region
      $region9: #{tpu_custom_call.1} parent=5 // pred_check
        _
      $region10: #{tpu_custom_call.1} parent=5 // pred_check_branch
        %200 = sbr.rel (%p197) target = $region12
      $region11: #{tpu_custom_call.1} parent=5 // pred_region
        %s201 = ssub.s32 %s15, 1
        // Predicated region
        $region13: #{tpu_custom_call.1} parent=11 // pred_check
          %p202 = pneg %p112
        $region14: #{tpu_custom_call.1} parent=11 // pred_check_branch
          %204 = sbr.rel (%p202) target = $region16
        $region15: #{tpu_custom_call.1} parent=11 // pred_region
          _
        $region16: #{tpu_custom_call.1} parent=11 // pred_fallthru
          _
        // Predicated region
        $region17: #{tpu_custom_call.1} parent=11 // pred_check
          %p205 = pneg %p133
        $region18: #{tpu_custom_call.1} parent=11 // pred_check_branch
          %207 = sbr.rel (%p205) target = $region20
        $region19: #{tpu_custom_call.1} parent=11 // pred_region
          _
        $region20: #{tpu_custom_call.1} parent=11 // pred_fallthru
          _
      $region12: #{tpu_custom_call.1} parent=5 // pred_fallthru
        _
      %p208 = scmp.lt.s32.totalorder %s15, 2
      // Predicated region
      $region21: #{tpu_custom_call.1} parent=5 // pred_check
        %p209 = pneg %p208
      $region22: #{tpu_custom_call.1} parent=5 // pred_check_branch
        %211 = sbr.rel (%p209) target = $region24
      $region23: #{tpu_custom_call.1} parent=5 // pred_region
        // Predicated region
        $region25: #{tpu_custom_call.1} parent=23 // pred_check
          %p212 = pneg %p53
        $region26: #{tpu_custom_call.1} parent=23 // pred_check_branch
          %214 = sbr.rel (%p212) target = $region28
        $region27: #{tpu_custom_call.1} parent=23 // pred_region
          %s215 = sadd.s32 %s22, %s23
          %p216 = scmp.lt.s32.totalorder %s215, 1
          %s217 = scalar_select %p216, %s215, 1
          %s218 = smul.u32 16, %s217
          %s219 = ssub.s32 25, %s218
          %p220 = scmp.lt.s32.totalorder %s219, 16
          %s221 = scalar_select %p220, %s219, 16
          %s222 = smul.u32 128, %s221
          %p223 = scmp.lt.s32.totalorder %s218, 24
          %s224 = scalar_select %p223, %s218, 24
          %s225 = smul.addr %s224, 8
          %s226 = scalar_lea.vmem %s0, %s225
          %s227 = sadd.s32 %s22, %s23
          %p228 = scmp.lt.s32.totalorder %s227, 1
          %s229 = scalar_select %p228, %s227, 1
          %s230 = smul.u32 16, %s229
          %s231 = ssub.s32 25, %s230
          %p232 = scmp.lt.s32.totalorder %s231, 16
          %s233 = scalar_select %p232, %s231, 16
          %s234 = smul.u32 128, %s233
        $region28: #{tpu_custom_call.1} parent=23 // pred_fallthru
          _
        // Predicated region
        $region29: #{tpu_custom_call.1} parent=23 // pred_check
          %p235 = pneg %p85
        $region30: #{tpu_custom_call.1} parent=23 // pred_check_branch
          %237 = sbr.rel (%p235) target = $region32
        $region31: #{tpu_custom_call.1} parent=23 // pred_region
          %s238 = sadd.s32 %s22, %s23
          %p239 = scmp.lt.s32.totalorder %s238, 1
          %s240 = scalar_select %p239, %s238, 1
          %p241 = scmp.lt.s32.totalorder %s240, 1
          %s242 = scalar_select %p241, %s240, 1
          %s243 = scalar_lea.vmem %s1, %s242
          %s244 = sadd.s32 %s22, %s23
          %p245 = scmp.lt.s32.totalorder %s244, 1
          %s246 = scalar_select %p245, %s244, 1
        $region32: #{tpu_custom_call.1} parent=23 // pred_fallthru
          _
      $region24: #{tpu_custom_call.1} parent=5 // pred_fallthru
        _
      %p247 = scmp.le.s32.totalorder 1, %s15
      %p248 = scmp.lt.s32.totalorder %s15, 3
      %p249 = pnand %p247, %p248
      %p250 = pneg %p249
      // Predicated region
      $region33: #{tpu_custom_call.1} parent=5 // pred_check
        _
      $region34: #{tpu_custom_call.1} parent=5 // pred_check_branch
        %252 = sbr.rel (%p249) target = $region36
      $region35: #{tpu_custom_call.1} parent=5 // pred_region
        %s253 = ssub.s32 %s15, 1
        %s254 = sadd.s32 %s24, %s25
        %p255 = scmp.lt.s32.totalorder %s254, 1
        %s256 = scalar_select %p255, %s254, 1
        %s257 = smul.u32 16, %s256
        %s258 = ssub.s32 25, %s257
        %p259 = scmp.lt.s32.totalorder %s258, 16
        %s260 = scalar_select %p259, %s258, 16
        %s261 = smul.u32 128, %s260
        %p262 = scmp.lt.s32.totalorder %s257, 24
        %s263 = scalar_select %p262, %s257, 24
        %s264 = smul.addr %s263, 8
        %s265 = scalar_lea.vmem %s0, %s264
        %p266 = pneg %p59
        %p267 = pneg %p56
        %s268 = sadd.s32 %s24, %s25
        %p269 = scmp.lt.s32.totalorder %s268, 1
        %s270 = scalar_select %p269, %s268, 1
        %p271 = scmp.lt.s32.totalorder %s270, 1
        %s272 = scalar_select %p271, %s270, 1
        %s273 = scalar_lea.vmem %s1, %s272
        %p274 = pneg %p91
        %p275 = pneg %p88
        %p276 = pneg %p112
        %p277 = pneg %p109
        %p278 = pneg %p133
        %p279 = pneg %p130
        %p280 = pneg %p161
        %p281 = pneg %p158
        %s282 = sadd.s32 %s24, %s25
        %s283 = smul.u32 16, %s282
        %p284 = scmp.lt.s32.totalorder %s283, 31
        %s285 = scalar_select %p284, %s283, 31
        %s286 = smul.addr %s285, 8
        %s287 = scalar_lea.vmem %s4, %s286
        %p288 = pneg %p187
        %p289 = pneg %p184
        %s290 = sand.u32 %s174, 1
        %s291 = scalar_lea.sflag [#allocation3], %s290
        %s292 = sand.u32 %s174, 1
        %s293 = smul.addr %s292, 8
        %s294 = scalar_lea.vmem [#allocation2], %s293
        %s295 = sadd.s32 %s24, %s25
        %p296 = scmp.lt.s32.totalorder %s295, 1
        %s297 = scalar_select %p296, %s295, 1
        %s298 = smul.u32 16, %s297
        %s299 = ssub.s32 25, %s298
        %p300 = scmp.lt.s32.totalorder %s299, 16
        %s301 = scalar_select %p300, %s299, 16
        %s302 = smul.u32 128, %s301
        %p303 = scmp.lt.s32.totalorder %s298, 24
        %s304 = scalar_select %p303, %s298, 24
        %s305 = smul.addr %s304, 8
        %s306 = scalar_lea.vmem %s0, %s305
        %s307 = sadd.s32 %s24, %s25
        %p308 = scmp.lt.s32.totalorder %s307, 1
        %s309 = scalar_select %p308, %s307, 1
        %s310 = smul.u32 16, %s309
        %s311 = ssub.s32 25, %s310
        %p312 = scmp.lt.s32.totalorder %s311, 16
        %s313 = scalar_select %p312, %s311, 16
        %s314 = smul.u32 128, %s313
        %s315 = sadd.s32 %s24, %s25
        %p316 = scmp.lt.s32.totalorder %s315, 1
        %s317 = scalar_select %p316, %s315, 1
        %p318 = scmp.lt.s32.totalorder %s317, 1
        %s319 = scalar_select %p318, %s317, 1
        %s320 = scalar_lea.vmem %s1, %s319
        %s321 = sadd.s32 %s24, %s25
        %p322 = scmp.lt.s32.totalorder %s321, 1
        %s323 = scalar_select %p322, %s321, 1
        %s324 = sadd.s32 %s24, %s25
        %s325 = smul.u32 16, %s324
        %p326 = scmp.lt.s32.totalorder %s325, 31
        %s327 = scalar_select %p326, %s325, 31
        %s328 = smul.addr %s327, 8
        %s329 = scalar_lea.vmem %s4, %s328
        %s330 = sadd.s32 %s24, %s25
        %s331 = smul.u32 16, %s330
        %s332 = sadd.s32 %s24, %s25
        %p333 = scmp.eq.s32.totalorder %s25, 0
        // Predicated region
        $region37: #{tpu_custom_call.1} parent=35 // pred_check
          %p334 = pneg %p333
        $region38: #{tpu_custom_call.1} parent=35 // pred_check_branch
          %336 = sbr.rel (%p334) target = $region40
        $region39: #{tpu_custom_call.1} parent=35 // pred_region
          %vm337 = vcmask 523264
          %338 = vst.msk [vmem:[%s294] sm:$0xff] %vm337, 0.0
        $region40: #{tpu_custom_call.1} parent=35 // pred_fallthru
          _
        %v339 = vld [vmem:[%s306] sm:$0xff]
        %v340 = vld [vmem:[%s306 + $0x8] sm:$0xff]
        %v341 = vld [vmem:[%s306 + $0x10] sm:$0xff]
        %v342 = vld [vmem:[%s306 + $0x18] sm:$0xff]
        %v343 = vld [vmem:[%s306 + $0x20] sm:$0xff]
        %v344 = vld [vmem:[%s306 + $0x28] sm:$0xff]
        %v345 = vld [vmem:[%s306 + $0x30] sm:$0xff]
        %v346 = vld [vmem:[%s306 + $0x38] sm:$0xff]
        %v347 = vld [vmem:[%s306 + $0x40] sm:$0xff]
        %v348 = vld [vmem:[%s306 + $0x48] sm:$0xff]
        %v349 = vld [vmem:[%s306 + $0x50] sm:$0xff]
        %v350 = vld [vmem:[%s306 + $0x58] sm:$0xff]
        %v351 = vld [vmem:[%s306 + $0x60] sm:$0xff]
        %v352 = vld [vmem:[%s306 + $0x68] sm:$0xff]
        %v353 = vld [vmem:[%s306 + $0x70] sm:$0xff]
        %v354 = vld [vmem:[%s306 + $0x78] sm:$0xff]
        %vm355 = vcmp.ge.f32.partialorder %v339, 0.0
        %vm356 = vcmp.ge.f32.partialorder %v340, 0.0
        %vm357 = vcmp.ge.f32.partialorder %v341, 0.0
        %vm358 = vcmp.ge.f32.partialorder %v342, 0.0
        %vm359 = vcmp.ge.f32.partialorder %v343, 0.0
        %vm360 = vcmp.ge.f32.partialorder %v344, 0.0
        %vm361 = vcmp.ge.f32.partialorder %v345, 0.0
        %vm362 = vcmp.ge.f32.partialorder %v346, 0.0
        %vm363 = vcmp.ge.f32.partialorder %v347, 0.0
        %vm364 = vcmp.ge.f32.partialorder %v348, 0.0
        %vm365 = vcmp.ge.f32.partialorder %v349, 0.0
        %vm366 = vcmp.ge.f32.partialorder %v350, 0.0
        %vm367 = vcmp.ge.f32.partialorder %v351, 0.0
        %vm368 = vcmp.ge.f32.partialorder %v352, 0.0
        %vm369 = vcmp.ge.f32.partialorder %v353, 0.0
        %vm370 = vcmp.ge.f32.partialorder %v354, 0.0
        %v371 = vmul.f32 %v339, 0.1
        %v372 = vmul.f32 %v340, 0.1
        %v373 = vmul.f32 %v341, 0.1
        %v374 = vmul.f32 %v342, 0.1
        %v375 = vmul.f32 %v343, 0.1
        %v376 = vmul.f32 %v344, 0.1
        %v377 = vmul.f32 %v345, 0.1
        %v378 = vmul.f32 %v346, 0.1
        %v379 = vmul.f32 %v347, 0.1
        %v380 = vmul.f32 %v348, 0.1
        %v381 = vmul.f32 %v349, 0.1
        %v382 = vmul.f32 %v350, 0.1
        %v383 = vmul.f32 %v351, 0.1
        %v384 = vmul.f32 %v352, 0.1
        %v385 = vmul.f32 %v353, 0.1
        %v386 = vmul.f32 %v354, 0.1
        %v387 = vsel %vm355, %v339, %v371
        %v388 = vsel %vm356, %v340, %v372
        %v389 = vsel %vm357, %v341, %v373
        %v390 = vsel %vm358, %v342, %v374
        %v391 = vsel %vm359, %v343, %v375
        %v392 = vsel %vm360, %v344, %v376
        %v393 = vsel %vm361, %v345, %v377
        %v394 = vsel %vm362, %v346, %v378
        %v395 = vsel %vm363, %v347, %v379
        %v396 = vsel %vm364, %v348, %v380
        %v397 = vsel %vm365, %v349, %v381
        %v398 = vsel %vm366, %v350, %v382
        %v399 = vsel %vm367, %v351, %v383
        %v400 = vsel %vm368, %v352, %v384
        %v401 = vsel %vm369, %v353, %v385
        %v402 = vsel %vm370, %v354, %v386
        %s403 = smul.u32 %s332, 128
        %s404 = sadd.s32 %s403, 0
        %v405 = vlaneseq
        %v406 = vshrl.u32 %v405, 7
        %v407 = vadd.s32 %v406, 8
        %v408 = vadd.s32 %v406, 16
        %v409 = vadd.s32 %v406, 24
        %v410 = vadd.s32 %v406, 32
        %v411 = vadd.s32 %v406, 40
        %v412 = vadd.s32 %v406, 48
        %v413 = vadd.s32 %v406, 56
        %v414 = vadd.s32 %v406, 64
        %v415 = vadd.s32 %v406, 72
        %v416 = vadd.s32 %v406, 80
        %v417 = vadd.s32 %v406, 88
        %v418 = vadd.s32 %v406, 96
        %v419 = vadd.s32 %v406, 104
        %v420 = vadd.s32 %v406, 112
        %v421 = vadd.s32 %v406, 120
        %v422 = vstv %s404
        %v423 = vadd.s32 %v422, %v406
        %v424 = vadd.s32 %v422, %v407
        %v425 = vadd.s32 %v422, %v408
        %v426 = vadd.s32 %v422, %v409
        %v427 = vadd.s32 %v422, %v410
        %v428 = vadd.s32 %v422, %v411
        %v429 = vadd.s32 %v422, %v412
        %v430 = vadd.s32 %v422, %v413
        %v431 = vadd.s32 %v422, %v414
        %v432 = vadd.s32 %v422, %v415
        %v433 = vadd.s32 %v422, %v416
        %v434 = vadd.s32 %v422, %v417
        %v435 = vadd.s32 %v422, %v418
        %v436 = vadd.s32 %v422, %v419
        %v437 = vadd.s32 %v422, %v420
        %v438 = vadd.s32 %v422, %v421
        %vm439 = vcmp.lt.s32.totalorder %v423, 200
        %vm440 = vcmp.lt.s32.totalorder %v424, 200
        %vm441 = vcmp.lt.s32.totalorder %v425, 200
        %vm442 = vcmp.lt.s32.totalorder %v426, 200
        %vm443 = vcmp.lt.s32.totalorder %v427, 200
        %vm444 = vcmp.lt.s32.totalorder %v428, 200
        %vm445 = vcmp.lt.s32.totalorder %v429, 200
        %vm446 = vcmp.lt.s32.totalorder %v430, 200
        %vm447 = vcmp.lt.s32.totalorder %v431, 200
        %vm448 = vcmp.lt.s32.totalorder %v432, 200
        %vm449 = vcmp.lt.s32.totalorder %v433, 200
        %vm450 = vcmp.lt.s32.totalorder %v434, 200
        %vm451 = vcmp.lt.s32.totalorder %v435, 200
        %vm452 = vcmp.lt.s32.totalorder %v436, 200
        %vm453 = vcmp.lt.s32.totalorder %v437, 200
        %vm454 = vcmp.lt.s32.totalorder %v438, 200
        %v455 = vsel %vm439, 1, 0
        %v456 = vsel %vm440, 1, 0
        %v457 = vsel %vm441, 1, 0
        %v458 = vsel %vm442, 1, 0
        %v459 = vsel %vm443, 1, 0
        %v460 = vsel %vm444, 1, 0
        %v461 = vsel %vm445, 1, 0
        %v462 = vsel %vm446, 1, 0
        %v463 = vsel %vm447, 1, 0
        %v464 = vsel %vm448, 1, 0
        %v465 = vsel %vm449, 1, 0
        %v466 = vsel %vm450, 1, 0
        %v467 = vsel %vm451, 1, 0
        %v468 = vsel %vm452, 1, 0
        %v469 = vsel %vm453, 1, 0
        %v470 = vsel %vm454, 1, 0
        %vm471 = vcmp.eq.s32.totalorder %v455, 1
        %vm472 = vcmp.eq.s32.totalorder %v456, 1
        %vm473 = vcmp.eq.s32.totalorder %v457, 1
        %vm474 = vcmp.eq.s32.totalorder %v458, 1
        %vm475 = vcmp.eq.s32.totalorder %v459, 1
        %vm476 = vcmp.eq.s32.totalorder %v460, 1
        %vm477 = vcmp.eq.s32.totalorder %v461, 1
        %vm478 = vcmp.eq.s32.totalorder %v462, 1
        %vm479 = vcmp.eq.s32.totalorder %v463, 1
        %vm480 = vcmp.eq.s32.totalorder %v464, 1
        %vm481 = vcmp.eq.s32.totalorder %v465, 1
        %vm482 = vcmp.eq.s32.totalorder %v466, 1
        %vm483 = vcmp.eq.s32.totalorder %v467, 1
        %vm484 = vcmp.eq.s32.totalorder %v468, 1
        %vm485 = vcmp.eq.s32.totalorder %v469, 1
        %vm486 = vcmp.eq.s32.totalorder %v470, 1
        %v487 = vsel %vm471, %v387, 0.0
        %v488 = vsel %vm472, %v388, 0.0
        %v489 = vsel %vm473, %v389, 0.0
        %v490 = vsel %vm474, %v390, 0.0
        %v491 = vsel %vm475, %v391, 0.0
        %v492 = vsel %vm476, %v392, 0.0
        %v493 = vsel %vm477, %v393, 0.0
        %v494 = vsel %vm478, %v394, 0.0
        %v495 = vsel %vm479, %v395, 0.0
        %v496 = vsel %vm480, %v396, 0.0
        %v497 = vsel %vm481, %v397, 0.0
        %v498 = vsel %vm482, %v398, 0.0
        %v499 = vsel %vm483, %v399, 0.0
        %v500 = vsel %vm484, %v400, 0.0
        %v501 = vsel %vm485, %v401, 0.0
        %v502 = vsel %vm486, %v402, 0.0
        %v503 = vld [vmem:[%s2] sm:$0xff]
        %v504 = vld [vmem:[%s2 + $0x8] sm:$0xff]
        %v505 = vld [vmem:[%s2 + $0x10] sm:$0xff]
        %v506 = vld [vmem:[%s2 + $0x18] sm:$0xff]
        %v507 = vld [vmem:[%s2 + $0x20] sm:$0xff]
        %v508 = vld [vmem:[%s2 + $0x28] sm:$0xff]
        %v509 = vld [vmem:[%s2 + $0x30] sm:$0xff]
        %v510 = vld [vmem:[%s2 + $0x38] sm:$0xff]
        %v511 = vld [vmem:[%s3] sm:$0x1]
        %v513 = vlaneseq
        %v514 = vshrl.u32 %v513, 7
        %v515 = vsub.s32 0, %v514
        %v516 = vrot.slane %v511, %v515
        %vm518 = vcmask 523264
        %v520 = vsel %vm518, %v487, 0
        %v523 = vsel %vm518, %v488, 0
        %v526 = vsel %vm518, %v489, 0
        %v529 = vsel %vm518, %v490, 0
        %v532 = vsel %vm518, %v491, 0
        %v535 = vsel %vm518, %v492, 0
        %v538 = vsel %vm518, %v493, 0
        %v541 = vsel %vm518, %v494, 0
        %v544 = vsel %vm518, %v495, 0
        %v547 = vsel %vm518, %v496, 0
        %v550 = vsel %vm518, %v497, 0
        %v553 = vsel %vm518, %v498, 0
        %v556 = vsel %vm518, %v499, 0
        %v559 = vsel %vm518, %v500, 0
        %v562 = vsel %vm518, %v501, 0
        %v565 = vsel %vm518, %v502, 0
        %567 = vmatprep.subr.mxu0 0.0
        %568 = vmatpush1.msra.mxu0 %v503
        %569 = vmatprep.subr.mxu0 0.0
        %570 = vmatpush1.msra.mxu0 %v504
        %571 = vmatprep.subr.mxu0 0.0
        %572 = vmatpush1.msra.mxu0 %v505
        %573 = vmatprep.subr.mxu0 0.0
        %574 = vmatpush1.msra.mxu0 %v506
        %575 = vmatprep.subr.mxu0 0.0
        %576 = vmatpush1.msra.mxu0 %v507
        %577 = vmatprep.subr.mxu0 0.0
        %578 = vmatpush1.msra.mxu0 %v508
        %579 = vmatprep.subr.mxu0 0.0
        %580 = vmatpush1.msra.mxu0 %v509
        %581 = vmatprep.subr.mxu0 0.0
        %582 = vmatpush1.msra.mxu0 %v510
        %583 = vmatprep.subr.mxu0 0.0
        %584 = vmatpush1.msra.mxu0 0.0
        %585 = vmatprep.subr.mxu0 0.0
        %586 = vmatpush1.msra.mxu0 0.0
        %587 = vmatprep.subr.mxu0 0.0
        %588 = vmatpush1.msra.mxu0 0.0
        %589 = vmatprep.subr.mxu0 0.0
        %590 = vmatpush1.msra.mxu0 0.0
        %591 = vmatprep.subr.mxu0 0.0
        %592 = vmatpush1.msra.mxu0 0.0
        %593 = vmatprep.subr.mxu0 0.0
        %594 = vmatpush1.msra.mxu0 0.0
        %595 = vmatprep.subr.mxu0 0.0
        %596 = vmatpush1.msra.mxu0 0.0
        %597 = vmatprep.subr.mxu0 0.0
        %598 = vmatpush1.msra.mxu0 0.0
        %599 = vmatprep.subr.mxu0 0.0
        %600 = vmatpush1.msra.mxu0 0.0
        %601 = vmatprep.subr.mxu0 0.0
        %602 = vmatpush1.msra.mxu0 0.0
        %603 = vmatprep.subr.mxu0 0.0
        %604 = vmatpush1.msra.mxu0 0.0
        %605 = vmatprep.subr.mxu0 0.0
        %606 = vmatpush1.msra.mxu0 0.0
        %607 = vmatprep.subr.mxu0 0.0
        %608 = vmatpush1.msra.mxu0 0.0
        %609 = vmatprep.subr.mxu0 0.0
        %610 = vmatpush1.msra.mxu0 0.0
        %611 = vmatprep.subr.mxu0 0.0
        %612 = vmatpush1.msra.mxu0 0.0
        %613 = vmatprep.subr.mxu0 0.0
        %614 = vmatpush1.msra.mxu0 0.0
        %615 = vmatprep.subr.mxu0 0.0
        %616 = vmatpush1.msra.mxu0 0.0
        %617 = vmatprep.subr.mxu0 0.0
        %618 = vmatpush1.msra.mxu0 0.0
        %619 = vmatprep.subr.mxu0 0.0
        %620 = vmatpush1.msra.mxu0 0.0
        %621 = vmatprep.subr.mxu0 0.0
        %622 = vmatpush1.msra.mxu0 0.0
        %623 = vmatprep.subr.mxu0 0.0
        %624 = vmatpush1.msra.mxu0 0.0
        %625 = vmatprep.subr.mxu0 0.0
        %626 = vmatpush1.msra.mxu0 0.0
        %627 = vmatprep.subr.mxu0 0.0
        %628 = vmatpush1.msra.mxu0 0.0
        %629 = vmatprep.subr.mxu0 0.0
        %630 = vmatpush1.msra.mxu0 0.0
        %631 = vmatprep.mubr.f32.mxu0 0.0
        %632 = vmatmul.mubr.f32.gmra.mrb[0].mxu0 %v520
        %v633 = vpop.f32.mrb[0].mxu0
        %v634 = vadd.f32 %v516, %v633
        %v635 = vpop.f32.mrb[0].mxu0
        %636 = vmatprep.mubr.f32.mxu0 0.0
        %637 = vmatmul.mubr.f32.gmra.mrb[0].mxu0 %v523
        %v638 = vpop.f32.mrb[0].mxu0
        %v639 = vadd.f32 %v516, %v638
        %v640 = vpop.f32.mrb[0].mxu0
        %641 = vmatprep.mubr.f32.mxu0 0.0
        %642 = vmatmul.mubr.f32.gmra.mrb[0].mxu0 %v526
        %v643 = vpop.f32.mrb[0].mxu0
        %v644 = vadd.f32 %v516, %v643
        %v645 = vpop.f32.mrb[0].mxu0
        %646 = vmatprep.mubr.f32.mxu0 0.0
        %647 = vmatmul.mubr.f32.gmra.mrb[0].mxu0 %v529
        %v648 = vpop.f32.mrb[0].mxu0
        %v649 = vadd.f32 %v516, %v648
        %v650 = vpop.f32.mrb[0].mxu0
        %651 = vmatprep.mubr.f32.mxu0 0.0
        %652 = vmatmul.mubr.f32.gmra.mrb[0].mxu0 %v532
        %v653 = vpop.f32.mrb[0].mxu0
        %v654 = vadd.f32 %v516, %v653
        %v655 = vpop.f32.mrb[0].mxu0
        %656 = vmatprep.mubr.f32.mxu0 0.0
        %657 = vmatmul.mubr.f32.gmra.mrb[0].mxu0 %v535
        %v658 = vpop.f32.mrb[0].mxu0
        %v659 = vadd.f32 %v516, %v658
        %v660 = vpop.f32.mrb[0].mxu0
        %661 = vmatprep.mubr.f32.mxu0 0.0
        %662 = vmatmul.mubr.f32.gmra.mrb[0].mxu0 %v538
        %v663 = vpop.f32.mrb[0].mxu0
        %v664 = vadd.f32 %v516, %v663
        %v665 = vpop.f32.mrb[0].mxu0
        %666 = vmatprep.mubr.f32.mxu0 0.0
        %667 = vmatmul.mubr.f32.gmra.mrb[0].mxu0 %v541
        %v668 = vpop.f32.mrb[0].mxu0
        %v669 = vadd.f32 %v516, %v668
        %v670 = vpop.f32.mrb[0].mxu0
        %671 = vmatprep.mubr.f32.mxu0 0.0
        %672 = vmatmul.mubr.f32.gmra.mrb[0].mxu0 %v544
        %v673 = vpop.f32.mrb[0].mxu0
        %v674 = vadd.f32 %v516, %v673
        %v675 = vpop.f32.mrb[0].mxu0
        %676 = vmatprep.mubr.f32.mxu0 0.0
        %677 = vmatmul.mubr.f32.gmra.mrb[0].mxu0 %v547
        %v678 = vpop.f32.mrb[0].mxu0
        %v679 = vadd.f32 %v516, %v678
        %v680 = vpop.f32.mrb[0].mxu0
        %681 = vmatprep.mubr.f32.mxu0 0.0
        %682 = vmatmul.mubr.f32.gmra.mrb[0].mxu0 %v550
        %v683 = vpop.f32.mrb[0].mxu0
        %v684 = vadd.f32 %v516, %v683
        %v685 = vpop.f32.mrb[0].mxu0
        %686 = vmatprep.mubr.f32.mxu0 0.0
        %687 = vmatmul.mubr.f32.gmra.mrb[0].mxu0 %v553
        %v688 = vpop.f32.mrb[0].mxu0
        %v689 = vadd.f32 %v516, %v688
        %v690 = vpop.f32.mrb[0].mxu0
        %691 = vmatprep.mubr.f32.mxu0 0.0
        %692 = vmatmul.mubr.f32.gmra.mrb[0].mxu0 %v556
        %v693 = vpop.f32.mrb[0].mxu0
        %v694 = vadd.f32 %v516, %v693
        %v695 = vpop.f32.mrb[0].mxu0
        %696 = vmatprep.mubr.f32.mxu0 0.0
        %697 = vmatmul.mubr.f32.gmra.mrb[0].mxu0 %v559
        %v698 = vpop.f32.mrb[0].mxu0
        %v699 = vadd.f32 %v516, %v698
        %v700 = vpop.f32.mrb[0].mxu0
        %701 = vmatprep.mubr.f32.mxu0 0.0
        %702 = vmatmul.mubr.f32.gmra.mrb[0].mxu0 %v562
        %v703 = vpop.f32.mrb[0].mxu0
        %v704 = vadd.f32 %v516, %v703
        %v705 = vpop.f32.mrb[0].mxu0
        %706 = vmatprep.mubr.f32.mxu0 0.0
        %707 = vmatmul.mubr.f32.gmra.mrb[0].mxu0 %v565
        %v708 = vpop.f32.mrb[0].mxu0
        %v709 = vadd.f32 %v516, %v708
        %v710 = vpop.f32.mrb[0].mxu0
        %711 = vdwg.mxu0
        %vm712 = vcmask 130048
        %713 = vst.msk [vmem:[%s329] sm:$0xff] %vm712, %v634
        %714 = vst.msk [vmem:[%s329 + $0x8] sm:$0xff] %vm712, %v639
        %715 = vst.msk [vmem:[%s329 + $0x10] sm:$0xff] %vm712, %v644
        %716 = vst.msk [vmem:[%s329 + $0x18] sm:$0xff] %vm712, %v649
        %717 = vst.msk [vmem:[%s329 + $0x20] sm:$0xff] %vm712, %v654
        %718 = vst.msk [vmem:[%s329 + $0x28] sm:$0xff] %vm712, %v659
        %719 = vst.msk [vmem:[%s329 + $0x30] sm:$0xff] %vm712, %v664
        %720 = vst.msk [vmem:[%s329 + $0x38] sm:$0xff] %vm712, %v669
        %721 = vst.msk [vmem:[%s329 + $0x40] sm:$0xff] %vm712, %v674
        %722 = vst.msk [vmem:[%s329 + $0x48] sm:$0xff] %vm712, %v679
        %723 = vst.msk [vmem:[%s329 + $0x50] sm:$0xff] %vm712, %v684
        %724 = vst.msk [vmem:[%s329 + $0x58] sm:$0xff] %vm712, %v689
        %725 = vst.msk [vmem:[%s329 + $0x60] sm:$0xff] %vm712, %v694
        %726 = vst.msk [vmem:[%s329 + $0x68] sm:$0xff] %vm712, %v699
        %727 = vst.msk [vmem:[%s329 + $0x70] sm:$0xff] %vm712, %v704
        %728 = vst.msk [vmem:[%s329 + $0x78] sm:$0xff] %vm712, %v709
        %v729 = vld [vmem:[%s320] sm:$0x1]
        %v730 = vlaneseq
        %v731 = vshrl.u32 %v730, 7
        %v732 = vsub.s32 0, %v731
        %v733 = vrot.slane %v729, %v732
        %vm734 = vcmp.eq.s32.totalorder %v406, %v733
        %v735 = vsel %vm734, 1, 0
        %v736 = vcvt.s32.f32 %v735
        %v737 = vld [vmem:[%s294] sm:$0xff]
        %738 = vmatprep.subr.mxu0 0.0
        %739 = vmatpush1.msra.mxu0 %v487
        %740 = vmatprep.subr.mxu0 0.0
        %741 = vmatpush1.msra.mxu0 %v488
        %742 = vmatprep.subr.mxu0 0.0
        %743 = vmatpush1.msra.mxu0 %v489
        %744 = vmatprep.subr.mxu0 0.0
        %745 = vmatpush1.msra.mxu0 %v490
        %746 = vmatprep.subr.mxu0 0.0
        %747 = vmatpush1.msra.mxu0 %v491
        %748 = vmatprep.subr.mxu0 0.0
        %749 = vmatpush1.msra.mxu0 %v492
        %750 = vmatprep.subr.mxu0 0.0
        %751 = vmatpush1.msra.mxu0 %v493
        %752 = vmatprep.subr.mxu0 0.0
        %753 = vmatpush1.msra.mxu0 %v494
        %754 = vmatprep.subr.mxu0 0.0
        %755 = vmatpush1.msra.mxu0 %v495
        %756 = vmatprep.subr.mxu0 0.0
        %757 = vmatpush1.msra.mxu0 %v496
        %758 = vmatprep.subr.mxu0 0.0
        %759 = vmatpush1.msra.mxu0 %v497
        %760 = vmatprep.subr.mxu0 0.0
        %761 = vmatpush1.msra.mxu0 %v498
        %762 = vmatprep.subr.mxu0 0.0
        %763 = vmatpush1.msra.mxu0 %v499
        %764 = vmatprep.subr.mxu0 0.0
        %765 = vmatpush1.msra.mxu0 %v500
        %766 = vmatprep.subr.mxu0 0.0
        %767 = vmatpush1.msra.mxu0 %v501
        %768 = vmatprep.subr.mxu0 0.0
        %769 = vmatpush1.msra.mxu0 %v502
        %770 = vmatprep.subr.mxu0 0.0
        %771 = vmatpush1.msra.mxu0 0.0
        %772 = vmatprep.subr.mxu0 0.0
        %773 = vmatpush1.msra.mxu0 0.0
        %774 = vmatprep.subr.mxu0 0.0
        %775 = vmatpush1.msra.mxu0 0.0
        %776 = vmatprep.subr.mxu0 0.0
        %777 = vmatpush1.msra.mxu0 0.0
        %778 = vmatprep.subr.mxu0 0.0
        %779 = vmatpush1.msra.mxu0 0.0
        %780 = vmatprep.subr.mxu0 0.0
        %781 = vmatpush1.msra.mxu0 0.0
        %782 = vmatprep.subr.mxu0 0.0
        %783 = vmatpush1.msra.mxu0 0.0
        %784 = vmatprep.subr.mxu0 0.0
        %785 = vmatpush1.msra.mxu0 0.0
        %786 = vmatprep.subr.mxu0 0.0
        %787 = vmatpush1.msra.mxu0 0.0
        %788 = vmatprep.subr.mxu0 0.0
        %789 = vmatpush1.msra.mxu0 0.0
        %790 = vmatprep.subr.mxu0 0.0
        %791 = vmatpush1.msra.mxu0 0.0
        %792 = vmatprep.subr.mxu0 0.0
        %793 = vmatpush1.msra.mxu0 0.0
        %794 = vmatprep.subr.mxu0 0.0
        %795 = vmatpush1.msra.mxu0 0.0
        %796 = vmatprep.subr.mxu0 0.0
        %797 = vmatpush1.msra.mxu0 0.0
        %798 = vmatprep.subr.mxu0 0.0
        %799 = vmatpush1.msra.mxu0 0.0
        %800 = vmatprep.subr.mxu0 0.0
        %801 = vmatpush1.msra.mxu0 0.0
        %802 = vmatprep.mubr.f32.mxu0 0.0
        %803 = vmatmul.mubr.f32.gmra.mrb[0].mxu0 %v736
        %v804 = vpop.f32.mrb[0].mxu0
        %v805 = vadd.f32 0.0, %v804
        %v806 = vpop.f32.mrb[0].mxu0
        %807 = vdwg.mxu0
        %v808 = vadd.f32 %v737, %v805
        %809 = vst.msk [vmem:[%s294] sm:$0xff] %vm518, %v808
        %s810 = sadd.s32 %s24, %s25
        %s811 = smul.u32 16, %s810
        %p812 = scmp.lt.s32.totalorder %s811, 31
        %s813 = scalar_select %p812, %s811, 31
        %s814 = smul.addr %s813, 8
        %s815 = scalar_lea.vmem %s4, %s814
        %s816 = sand.u32 %s174, 1
        %s817 = scalar_lea.sflag [#allocation3], %s816
        %s818 = sand.u32 %s174, 1
        %s819 = smul.addr %s818, 8
        %s820 = scalar_lea.vmem [#allocation2], %s819
        // Predicated region
        $region41: #{tpu_custom_call.1} parent=35 // pred_check
          %p821 = pneg %p158
        $region42: #{tpu_custom_call.1} parent=35 // pred_check_branch
          %823 = sbr.rel (%p821) target = $region44
        $region43: #{tpu_custom_call.1} parent=35 // pred_region
          %s824 = sadd.s32 %s24, %s25
          %s825 = smul.u32 16, %s824
        $region44: #{tpu_custom_call.1} parent=35 // pred_fallthru
          _
        // Predicated region
        $region45: #{tpu_custom_call.1} parent=35 // pred_check
          %p826 = pneg %p184
        $region46: #{tpu_custom_call.1} parent=35 // pred_check_branch
          %828 = sbr.rel (%p826) target = $region48
        $region47: #{tpu_custom_call.1} parent=35 // pred_region
          %s830 = ssub.s32 128, 128
          %831 = vsyncadd %s817, %s830
          %s832 = smul.addr %s24, 128
          %s833 = scalar_lea.hbm %s5, %s832
          %s835 = sshll.u32 %s820, 4
          %s836 = int_to_ptr.vmem [resolvable:$true] %s835
          %838 = dma.vmem_to_hbm [thread:$0]  %s836, 128, %s833, %s817
        $region48: #{tpu_custom_call.1} parent=35 // pred_fallthru
          _
      $region36: #{tpu_custom_call.1} parent=5 // pred_fallthru
        _
      %p839 = scmp.le.s32.totalorder 2, %s15
      // Predicated region
      $region49: #{tpu_custom_call.1} parent=5 // pred_check
        %p840 = pneg %p839
      $region50: #{tpu_custom_call.1} parent=5 // pred_check_branch
        %842 = sbr.rel (%p840) target = $region52
      $region51: #{tpu_custom_call.1} parent=5 // pred_region
        %s843 = ssub.s32 %s15, 2
        // Predicated region
        $region53: #{tpu_custom_call.1} parent=51 // pred_check
          %p844 = pneg %p164
        $region54: #{tpu_custom_call.1} parent=51 // pred_check_branch
          %846 = sbr.rel (%p844) target = $region56
        $region55: #{tpu_custom_call.1} parent=51 // pred_region
          %s847 = sadd.s32 %s26, %s27
          %s848 = smul.u32 16, %s847
          %p849 = scmp.lt.s32.totalorder %s848, 31
          %s850 = scalar_select %p849, %s848, 31
          %s851 = smul.addr %s850, 8
          %s852 = scalar_lea.vmem %s4, %s851
        $region56: #{tpu_custom_call.1} parent=51 // pred_fallthru
          _
        // Predicated region
        $region57: #{tpu_custom_call.1} parent=51 // pred_check
          %p853 = pneg %p190
        $region58: #{tpu_custom_call.1} parent=51 // pred_check_branch
          %855 = sbr.rel (%p853) target = $region60
        $region59: #{tpu_custom_call.1} parent=51 // pred_region
          %s856 = sand.u32 %s175, 1
          %s857 = scalar_lea.sflag [#allocation3], %s856
          %s858 = sand.u32 %s175, 1
          %s859 = smul.addr %s858, 8
          %s860 = scalar_lea.vmem [#allocation2], %s859
          %861 = dma.done %s857, 128
        $region60: #{tpu_custom_call.1} parent=51 // pred_fallthru
          _
      $region52: #{tpu_custom_call.1} parent=5 // pred_fallthru
        _
    $region6: #{tpu_custom_call.1} parent=1 // loop_footer
      %s19 = sadd.s32 1, %s15
    $region7: #{tpu_custom_call.1} parent=1 // loop_footer_branch
      %14 = sbr.rel target = $region3
    $region8: #{tpu_custom_call.1} parent=1 // loop_exit
      _
    %862 = vsyncpa [#allocation3], 1
    %s863 = scalar_lea.sflag [#allocation3], 1
    %864 = vsyncpa %s863, 1

</llo_original>
